<compile_context>
chip_gen: v7x
topology: tpu7x:2x2x1
jax: 0.10.0
libtpu: 0.0.40
codegen_flags: <defaults>
</compile_context>

<pallas_src>
import functools
import math

import jax
import jax.numpy as jnp
from jax.experimental import pallas as pl
from jax.experimental.pallas import tpu as pltpu

_NEG = -1e30  # finite "masked" value; -inf can yield NaN rows when fully masked


# ----------------------------------------------------------------------------
# helpers
# ----------------------------------------------------------------------------
def _round_up(x, m):
    return ((x + m - 1) // m) * m


def _tile_dim(d, target, align):
    """Largest tile <= target that is a multiple of `align` and divides d.
    Falls back to (target, padded_dim) only when no such tile exists."""
    if d <= target:
        return d, d
    t = (target // align) * align
    while t >= align:
        if d % t == 0:
            return t, d
        t -= align
    return target, _round_up(d, target)


def _pad2(a, rows, cols):
    pr, pc = rows - a.shape[0], cols - a.shape[1]
    if pr or pc:
        a = jnp.pad(a, ((0, pr), (0, pc)))
    return a


# ----------------------------------------------------------------------------
# Tiled linear: y = x @ w (+ b); bf16 MXU operands, f32 VMEM accumulator
# ----------------------------------------------------------------------------
def _matmul_kernel(*refs, has_bias):
    if has_bias:
        x_ref, w_ref, b_ref, o_ref, acc_ref = refs
    else:
        x_ref, w_ref, o_ref, acc_ref = refs
        b_ref = None

    @pl.when(pl.program_id(2) == 0)
    def _():
        acc_ref[...] = jnp.zeros_like(acc_ref)

    x = x_ref[...]
    if x.dtype != jnp.bfloat16:
        x = x.astype(jnp.bfloat16)
    w = w_ref[...]
    if w.dtype != jnp.bfloat16:
        w = w.astype(jnp.bfloat16)
    acc_ref[...] += jnp.dot(x, w, preferred_element_type=jnp.float32)

    @pl.when(pl.program_id(2) == pl.num_programs(2) - 1)
    def _():
        y = acc_ref[...]
        if has_bias:
            y = y + b_ref[...]
        o_ref[...] = y.astype(o_ref.dtype)


def pallas_linear(x, w, b=None, out_dtype=jnp.bfloat16):
    """x:[M,K] @ w:[K,N] (+ b:[N]) -> [M,N] in `out_dtype` (default bf16)."""
    M, K = x.shape
    N = w.shape[1]
    tm, Mp = _tile_dim(M, 256, 8)
    tn, Np = _tile_dim(N, 512, 128)
    tk, Kp = _tile_dim(K, 512, 128)

    xp = _pad2(x, Mp, Kp)      # no-op copies at aligned sizes
    wp = _pad2(w, Kp, Np)

    has_bias = b is not None
    args = [xp, wp]
    in_specs = [
        pl.BlockSpec((tm, tk), lambda i, j, k: (i, k)),
        pl.BlockSpec((tk, tn), lambda i, j, k: (k, j)),
    ]
    if has_bias:
        bp = _pad2(b.reshape(1, N).astype(jnp.float32), 1, Np)
        args.append(bp)
        in_specs.append(pl.BlockSpec((1, tn), lambda i, j, k: (0, j)))

    x_bytes = xp.dtype.itemsize
    w_bytes = wp.dtype.itemsize
    o_bytes = jnp.dtype(out_dtype).itemsize
    out = pl.pallas_call(
        functools.partial(_matmul_kernel, has_bias=has_bias),
        grid=(Mp // tm, Np // tn, Kp // tk),
        in_specs=in_specs,
        out_specs=pl.BlockSpec((tm, tn), lambda i, j, k: (i, j)),
        out_shape=jax.ShapeDtypeStruct((Mp, Np), out_dtype),
        scratch_shapes=[pltpu.VMEM((tm, tn), jnp.float32)],
        compiler_params=pltpu.CompilerParams(
            dimension_semantics=("parallel", "parallel", "arbitrary")),
        cost_estimate=pl.CostEstimate(
            flops=2 * Mp * Np * Kp,
            transcendentals=0,
            bytes_accessed=Mp * Kp * x_bytes + Kp * Np * w_bytes + Mp * Np * o_bytes),
    )(*args)
    if Mp != M or Np != N:
        out = out[:M, :N]
    return out


# ----------------------------------------------------------------------------
# Fused feed-forward: relu(x @ w1 + b1) @ w2 + b2, chunked over the hidden dim
# so the [M, F] intermediate never exists (f32 VMEM accumulator over F chunks)
# ----------------------------------------------------------------------------
def _ffn_kernel(x_ref, w1_ref, b1_ref, w2_ref, b2_ref, o_ref, acc_ref):
    @pl.when(pl.program_id(1) == 0)
    def _():
        acc_ref[...] = jnp.zeros_like(acc_ref)

    x = x_ref[...]
    if x.dtype != jnp.bfloat16:
        x = x.astype(jnp.bfloat16)
    h = jnp.dot(x, w1_ref[...], preferred_element_type=jnp.float32) + b1_ref[...]
    h = jnp.maximum(h, 0.0)
    acc_ref[...] += jnp.dot(h.astype(jnp.bfloat16), w2_ref[...],
                            preferred_element_type=jnp.float32)

    @pl.when(pl.program_id(1) == pl.num_programs(1) - 1)
    def _():
        o_ref[...] = (acc_ref[...] + b2_ref[...]).astype(o_ref.dtype)


def pallas_ffn(x, w1, b1, w2, b2):
    """x:[M,E] -> bf16 [M,E]; hidden activations stay in VMEM only."""
    M, E = x.shape
    F = w1.shape[1]
    tm, Mp = _tile_dim(M, 128, 8)
    tf, Fp = _tile_dim(F, 512, 128)

    xp = _pad2(x, Mp, E)
    w1p = _pad2(w1, E, Fp)
    b1p = _pad2(b1.reshape(1, F).astype(jnp.float32), 1, Fp)
    w2p = _pad2(w2, Fp, E)

    out = pl.pallas_call(
        _ffn_kernel,
        grid=(Mp // tm, Fp // tf),
        in_specs=[
            pl.BlockSpec((tm, E), lambda i, j: (i, 0)),
            pl.BlockSpec((E, tf), lambda i, j: (0, j)),
            pl.BlockSpec((1, tf), lambda i, j: (0, j)),
            pl.BlockSpec((tf, E), lambda i, j: (j, 0)),
            pl.BlockSpec((1, E), lambda i, j: (0, 0)),
        ],
        out_specs=pl.BlockSpec((tm, E), lambda i, j: (i, 0)),
        out_shape=jax.ShapeDtypeStruct((Mp, E), jnp.bfloat16),
        scratch_shapes=[pltpu.VMEM((tm, E), jnp.float32)],
        compiler_params=pltpu.CompilerParams(
            dimension_semantics=("parallel", "arbitrary")),
    )(xp, w1p, b1p, w2p, b2.reshape(1, E).astype(jnp.float32))
    return out[:M] if Mp != M else out


# ----------------------------------------------------------------------------
# Fused residual-add + LayerNorm (f32 math in-kernel, bf16 activations in HBM)
# ----------------------------------------------------------------------------
def _add_ln_kernel(x_ref, r_ref, g_ref, b_ref, o_ref, *, eps):
    x = x_ref[...].astype(jnp.float32) + r_ref[...].astype(jnp.float32)
    mu = jnp.mean(x, axis=-1, keepdims=True)
    var = jnp.mean(jnp.square(x - mu), axis=-1, keepdims=True)
    y = (x - mu) * jax.lax.rsqrt(var + eps) * g_ref[...] + b_ref[...]
    o_ref[...] = y.astype(o_ref.dtype)


def pallas_add_layernorm(x, res, gamma, beta, eps=1e-5):
    M, E = x.shape
    tm, Mp = _tile_dim(M, 256, 8)
    xp = _pad2(x, Mp, E)
    rp = _pad2(res, Mp, E)
    out = pl.pallas_call(
        functools.partial(_add_ln_kernel, eps=eps),
        grid=(Mp // tm,),
        in_specs=[
            pl.BlockSpec((tm, E), lambda i: (i, 0)),
            pl.BlockSpec((tm, E), lambda i: (i, 0)),
            pl.BlockSpec((1, E), lambda i: (0, 0)),
            pl.BlockSpec((1, E), lambda i: (0, 0)),
        ],
        out_specs=pl.BlockSpec((tm, E), lambda i: (i, 0)),
        out_shape=jax.ShapeDtypeStruct((Mp, E), jnp.bfloat16),
        compiler_params=pltpu.CompilerParams(dimension_semantics=("parallel",)),
    )(xp, rp, gamma.reshape(1, E).astype(jnp.float32),
      beta.reshape(1, E).astype(jnp.float32))
    return out[:M] if Mp != M else out


# ----------------------------------------------------------------------------
# Embedding lookup: 8 rows per grid step via manual DMA into a VMEM scratch
# (scalar-prefetched token ids in SMEM, table kept in HBM)
# ----------------------------------------------------------------------------
_EMB_ROWS = 8


def _emb_gather_kernel(ids_ref, table_ref, o_ref, scratch, sems, *, rows):
    base = pl.program_id(0) * rows
    copies = []
    for r in range(rows):
        cp = pltpu.make_async_copy(
            table_ref.at[pl.ds(ids_ref[base + r], 1)],
            scratch.at[pl.ds(r, 1)],
            sems.at[r])
        cp.start()
        copies.append(cp)
    for cp in copies:
        cp.wait()
    o_ref[...] = scratch[...]


def pallas_embedding(ids, table, rows=_EMB_ROWS):
    """ids:[N] int, table:[V,E] -> [N,E] (dtype of table)."""
    N = ids.shape[0]
    V, E = table.shape
    Np = _round_up(N, rows)
    ids_p = ids.astype(jnp.int32)
    if Np != N:
        ids_p = jnp.pad(ids_p, (0, Np - N))
    out = pl.pallas_call(
        functools.partial(_emb_gather_kernel, rows=rows),
        grid_spec=pltpu.PrefetchScalarGridSpec(
            num_scalar_prefetch=1,
            grid=(Np // rows,),
            in_specs=[pl.BlockSpec(memory_space=pl.ANY)],
            out_specs=pl.BlockSpec((rows, E), lambda i, ids_ref: (i, 0)),
            scratch_shapes=[pltpu.VMEM((rows, E), table.dtype),
                            pltpu.SemaphoreType.DMA((rows,))],
        ),
        out_shape=jax.ShapeDtypeStruct((Np, E), table.dtype),
        compiler_params=pltpu.CompilerParams(dimension_semantics=("arbitrary",)),
    )(ids_p, table)
    return out[:N] if Np != N else out


# ----------------------------------------------------------------------------
# Attention kernels: per-batch grid, unrolled per-head loop, in-kernel masks,
# f32 softmax, scale folded into q, bf16 context output
# ----------------------------------------------------------------------------
def _attend_head(q, k, v, bias, causal):
    """q:[Tq,Dh] (pre-scaled bf16), k/v:[Tk,Dh] bf16, bias: None or [1,Tk] f32."""
    s = jax.lax.dot_general(q, k, (((1,), (1,)), ((), ())),
                            preferred_element_type=jnp.float32)   # [Tq, Tk]
    if causal:
        Tq, Tk = s.shape
        row = jax.lax.broadcasted_iota(jnp.int32, (Tq, Tk), 0)
        col = jax.lax.broadcasted_iota(jnp.int32, (Tq, Tk), 1)
        s = jnp.where(col > row, _NEG, s)
    if bias is not None:
        s = s + bias
    m = jnp.max(s, axis=-1, keepdims=True)
    p = jnp.exp(s - m)
    denom = jnp.sum(p, axis=-1, keepdims=True)
    p = p * pl.reciprocal(denom, approx=True)
    ctx = jnp.dot(p.astype(v.dtype), v, preferred_element_type=jnp.float32)
    return ctx, p


def _self_attn_kernel(*refs, H, Dh, scale, causal, has_pad):
    if has_pad:
        qkv_ref, pad_ref, o_ref = refs
    else:
        qkv_ref, o_ref = refs
        pad_ref = None
    E = H * Dh
    bias = pad_ref[0] if has_pad else None          # [1, Tk] additive, f32
    for h in range(H):
        q = qkv_ref[0, :, h * Dh:(h + 1) * Dh] * scale
        k = qkv_ref[0, :, E + h * Dh:E + (h + 1) * Dh]
        v = qkv_ref[0, :, 2 * E + h * Dh:2 * E + (h + 1) * Dh]
        ctx, _ = _attend_head(q, k, v, bias, causal)
        o_ref[0, :, h * Dh:(h + 1) * Dh] = ctx.astype(o_ref.dtype)


def _cross_attn_kernel(q_ref, kv_ref, o_ref, a_ref, *, H, Dh, scale):
    E = H * Dh
    for h in range(H):
        q = q_ref[0, :, h * Dh:(h + 1) * Dh] * scale
        k = kv_ref[0, :, h * Dh:(h + 1) * Dh]
        v = kv_ref[0, :, E + h * Dh:E + (h + 1) * Dh]
        ctx, p = _attend_head(q, k, v, None, False)
        o_ref[0, :, h * Dh:(h + 1) * Dh] = ctx.astype(o_ref.dtype)
        a_ref[0, h] = p


def pallas_self_attention(qkv, num_heads, *, causal=False, key_pad_add=None):
    """qkv:[B,T,3E] bf16 -> context [B,T,E] bf16."""
    B, T, threeE = qkv.shape
    E = threeE // 3
    H, Dh = num_heads, E // num_heads
    has_pad = key_pad_add is not None

    args = [qkv]
    in_specs = [pl.BlockSpec((1, T, threeE), lambda bb: (bb, 0, 0))]
    if has_pad:
        args.append(key_pad_add.reshape(B, 1, T).astype(jnp.float32))
        in_specs.append(pl.BlockSpec((1, 1, T), lambda bb: (bb, 0, 0)))

    return pl.pallas_call(
        functools.partial(_self_attn_kernel, H=H, Dh=Dh,
                          scale=1.0 / math.sqrt(Dh), causal=causal,
                          has_pad=has_pad),
        grid=(B,),
        in_specs=in_specs,
        out_specs=pl.BlockSpec((1, T, E), lambda bb: (bb, 0, 0)),
        out_shape=jax.ShapeDtypeStruct((B, T, E), jnp.bfloat16),
        compiler_params=pltpu.CompilerParams(dimension_semantics=("parallel",)),
    )(*args)


def pallas_cross_attention(q, kv, num_heads):
    """q:[B,Tq,E], kv:[B,Tk,2E] (bf16) -> (context bf16 [B,Tq,E], probs f32 [B,H,Tq,Tk])."""
    B, Tq, E = q.shape
    Tk = kv.shape[1]
    H, Dh = num_heads, E // num_heads
    # TODO(synk): probs last dim (Tk) is not a multiple of 128 -> masked partial
    # stores; acceptable here since probs are a small, final output.
    out, probs = pl.pallas_call(
        functools.partial(_cross_attn_kernel, H=H, Dh=Dh,
                          scale=1.0 / math.sqrt(Dh)),
        grid=(B,),
        in_specs=[pl.BlockSpec((1, Tq, E), lambda bb: (bb, 0, 0)),
                  pl.BlockSpec((1, Tk, 2 * E), lambda bb: (bb, 0, 0))],
        out_specs=(pl.BlockSpec((1, Tq, E), lambda bb: (bb, 0, 0)),
                   pl.BlockSpec((1, H, Tq, Tk), lambda bb: (bb, 0, 0, 0))),
        out_shape=(jax.ShapeDtypeStruct((B, Tq, E), jnp.bfloat16),
                   jax.ShapeDtypeStruct((B, H, Tq, Tk), jnp.float32)),
        compiler_params=pltpu.CompilerParams(dimension_semantics=("parallel",)),
    )(q, kv)
    return out, probs


# ----------------------------------------------------------------------------
# Model glue (plain JAX reshapes only) built on the Pallas kernels.
# Internal compute layout is batch-first [B, T, E]; bf16 activations.
# ----------------------------------------------------------------------------
def mha_self(x, p, num_heads, *, causal=False, key_pad_add=None):
    B, T, E = x.shape
    qkv = pallas_linear(x.reshape(B * T, E), p["w_qkv"], p["b_qkv"])   # [B*T,3E] bf16
    ctx = pallas_self_attention(qkv.reshape(B, T, 3 * E), num_heads,
                                causal=causal, key_pad_add=key_pad_add)
    out = pallas_linear(ctx.reshape(B * T, E), p["wo"], p["bo"])
    return out.reshape(B, T, E)


def mha_cross(q_in, mem, p, num_heads):
    B, Tq, E = q_in.shape
    Tk = mem.shape[1]
    q = pallas_linear(q_in.reshape(B * Tq, E), p["wq"], p["bq"])
    kv = pallas_linear(mem.reshape(B * Tk, E), p["w_kv"], p["b_kv"])
    ctx, probs = pallas_cross_attention(q.reshape(B, Tq, E),
                                        kv.reshape(B, Tk, 2 * E), num_heads)
    out = pallas_linear(ctx.reshape(B * Tq, E), p["wo"], p["bo"])
    return out.reshape(B, Tq, E), probs


def encoder_layer_fwd(x, p, num_heads):
    B, T, E = x.shape
    attn_out = mha_self(x, p["mha"], num_heads)                      # no probs written
    y = pallas_add_layernorm(attn_out.reshape(B * T, E), x.reshape(B * T, E),
                             p["ln1_g"], p["ln1_b"])
    h = pallas_ffn(y, p["conv1_w"], p["conv1_b"], p["conv2_w"], p["conv2_b"])
    out = pallas_add_layernorm(h, y, p["ln2_g"], p["ln2_b"])
    return out.reshape(B, T, E)


def decoder_layer_fwd(x, mem, pad_add, p, num_heads):
    B, T, E = x.shape
    sa = mha_self(x, p["self_mha"], num_heads, causal=True, key_pad_add=pad_add)
    x2 = pallas_add_layernorm(x.reshape(B * T, E), sa.reshape(B * T, E),
                              p["ln1_g"], p["ln1_b"]).reshape(B, T, E)
    ca, attns = mha_cross(x2, mem, p["cross_mha"], num_heads)
    x3 = pallas_add_layernorm(x2.reshape(B * T, E), ca.reshape(B * T, E),
                              p["ln2_g"], p["ln2_b"])
    h = pallas_ffn(x3, p["ff1_w"], p["ff1_b"], p["ff2_w"], p["ff2_b"])
    x4 = pallas_add_layernorm(x3, h, p["ln3_g"], p["ln3_b"]).reshape(B, T, E)
    return x4, attns


def encoder_fwd(x, layer_params, num_heads, batch_first=False):
    # mirrors Encoder.forward heuristic; layers attend over the "sequence" axis
    # of the (possibly transposed) layer input; internal layout is batch-first.
    is_batch_first = (x.ndim == 3) and (x.shape[0] > x.shape[1])
    heuristic_transposed = (is_batch_first != batch_first)
    xi = x if heuristic_transposed else jnp.transpose(x, (1, 0, 2))
    xi = xi.astype(jnp.bfloat16)
    for p in layer_params:
        xi = encoder_layer_fwd(xi, p, num_heads)
    # return in the same axis order as the input x (reference transposes back)
    return xi if heuristic_transposed else jnp.transpose(xi, (1, 0, 2))


def decoder_fwd(captions, src_img, params, num_heads, pad_id):
    # mirrors Decoder.forward; internal memory layout is batch-first [B, S, E]
    B, T = captions.shape
    E = params["emb"].shape[1]
    if src_img.ndim == 3 and src_img.shape[0] == B:
        mem = src_img
    else:
        mem = jnp.transpose(src_img, (1, 0, 2))
    mem = mem.astype(jnp.bfloat16)

    # additive key-padding mask [B, T]: 0 for real tokens, -1e30 for pads
    pad_add = jnp.where(captions == pad_id, _NEG, 0.0).astype(jnp.float32)

    # embedding gather + positional encoding; dropout identity (eval mode)
    emb = pallas_embedding(captions.reshape(-1), params["emb"])        # [B*T, E] bf16
    x = emb.reshape(B, T, E) + params["pe"][:T][None, :, :]            # bf16

    attns_all = []
    for p in params["layers"]:
        x, attns = decoder_layer_fwd(x, mem, pad_add, p, num_heads)
        attns_all.append(attns)
    return x, jnp.stack(attns_all)


def transformer_fwd(images, captions, params, cfg):
    # mirrors Transformer.forward (3-D image feature branch, internal encoder)
    batch_first = False
    if images.ndim != 3:
        raise ValueError("expected [batch, encode^2, d_model] image features")
    if batch_first and images.shape[0] < images.shape[1]:
        images = jnp.transpose(images, (1, 0, 2))
    elif (not batch_first) and images.shape[0] > images.shape[1]:
        images = jnp.transpose(images, (1, 0, 2))
    images_encoded = encoder_fwd(images, params["encoder"],
                                 cfg["enc_n_heads"], batch_first)

    tgt, attns = decoder_fwd(captions, images_encoded, params["decoder"],
                             cfg["dec_n_heads"], cfg["pad_id"])
    B, T, E = tgt.shape
    V = cfg["vocab_size"]
    preds = pallas_linear(tgt.reshape(B * T, E), params["pred_w"], None,
                          out_dtype=jnp.float32)
    return preds.reshape(B, T, V), attns


# ----------------------------------------------------------------------------
# Deterministic parameter init (synthetic; mirrors module __init__ shapes).
# Matmul weights / embedding / PE in bf16, biases / LayerNorm params in f32.
# ----------------------------------------------------------------------------
def init_params(key, cfg):
    E, F_enc, F_dec, V = (cfg["d_model"], cfg["enc_ff_dim"],
                          cfg["dec_ff_dim"], cfg["vocab_size"])
    keys = iter(jax.random.split(key, 512))

    def nrm(shape, scale=0.02, dtype=jnp.bfloat16):
        return (scale * jax.random.normal(next(keys), shape, jnp.float32)).astype(dtype)

    def self_mha_p():
        return dict(w_qkv=nrm((E, 3 * E)), b_qkv=nrm((3 * E,), dtype=jnp.float32),
                    wo=nrm((E, E)), bo=nrm((E,), dtype=jnp.float32))

    def cross_mha_p():
        return dict(wq=nrm((E, E)), bq=nrm((E,), dtype=jnp.float32),
                    w_kv=nrm((E, 2 * E)), b_kv=nrm((2 * E,), dtype=jnp.float32),
                    wo=nrm((E, E)), bo=nrm((E,), dtype=jnp.float32))

    def enc_layer_p():
        return dict(mha=self_mha_p(),
                    ln1_g=jnp.ones((E,), jnp.float32), ln1_b=jnp.zeros((E,), jnp.float32),
                    conv1_w=nrm((E, F_enc)), conv1_b=nrm((F_enc,), dtype=jnp.float32),
                    conv2_w=nrm((F_enc, E)), conv2_b=nrm((E,), dtype=jnp.float32),
                    ln2_g=jnp.ones((E,), jnp.float32), ln2_b=jnp.zeros((E,), jnp.float32))

    def dec_layer_p():
        return dict(self_mha=self_mha_p(), cross_mha=cross_mha_p(),
                    ln1_g=jnp.ones((E,), jnp.float32), ln1_b=jnp.zeros((E,), jnp.float32),
                    ln2_g=jnp.ones((E,), jnp.float32), ln2_b=jnp.zeros((E,), jnp.float32),
                    ff1_w=nrm((E, F_dec)), ff1_b=nrm((F_dec,), dtype=jnp.float32),
                    ff2_w=nrm((F_dec, E)), ff2_b=nrm((E,), dtype=jnp.float32),
                    ln3_g=jnp.ones((E,), jnp.float32), ln3_b=jnp.zeros((E,), jnp.float32))

    # nn.Embedding with padding_idx: pad row zeroed
    emb = nrm((V, E), scale=1.0, dtype=jnp.float32)
    emb = emb.at[cfg["pad_id"]].set(0.0).astype(jnp.bfloat16)

    # sin/cos positional encoding table [max_len, d_model]
    pos = jnp.arange(cfg["max_len"], dtype=jnp.float32)[:, None]
    div = jnp.exp(jnp.arange(0, E, 2, dtype=jnp.float32) * (-math.log(10000.0) / E))
    pe = jnp.zeros((cfg["max_len"], E), jnp.float32)
    pe = pe.at[:, 0::2].set(jnp.sin(pos * div))
    pe = pe.at[:, 1::2].set(jnp.cos(pos * div))
    pe = pe.astype(jnp.bfloat16)

    return dict(
        encoder=[enc_layer_p() for _ in range(cfg["enc_n_layers"])],
        decoder=dict(emb=emb, pe=pe,
                     layers=[dec_layer_p() for _ in range(cfg["dec_n_layers"])]),
        pred_w=nrm((E, V)),
    )


# ----------------------------------------------------------------------------
if __name__ == "__main__":
    cfg = dict(
        vocab_size=32, d_model=32, img_encode_size=4,   # encode_size^2 = 16 tokens
        enc_ff_dim=64, dec_ff_dim=64,
        enc_n_layers=2, dec_n_layers=2,
        enc_n_heads=4, dec_n_heads=4,
        max_len=9, pad_id=0,
    )

    root = jax.random.PRNGKey(0)
    k_param, k_img, k_cap = jax.random.split(root, 3)

    params = init_params(k_param, cfg)

    batch = 2
    n_tok = cfg["img_encode_size"] ** 2                       # 16
    images = jax.random.normal(k_img, (batch, n_tok, cfg["d_model"]), jnp.float32)
    captions = jax.random.randint(k_cap, (batch, cfg["max_len"] - 1), 1, cfg["vocab_size"])

    preds, attns = transformer_fwd(images, captions, params, cfg)
    preds = jax.block_until_ready(preds)
    attns = jax.block_until_ready(attns)

    assert preds.shape == (batch, cfg["max_len"] - 1, cfg["vocab_size"]), preds.shape
    assert attns.shape == (cfg["dec_n_layers"], batch, cfg["dec_n_heads"],
                           cfg["max_len"] - 1, n_tok), attns.shape
    assert bool(jnp.all(jnp.isfinite(preds))) and bool(jnp.all(jnp.isfinite(attns)))

    print("KERNEL_OK")
</pallas_src>

<mosaic_0001>
module attributes {stable_mosaic.version = 11 : i64} {
  func.func @_matmul_kernel(%arg0: i32, %arg1: i32, %arg2: i32, %arg3: memref<32x32xbf16, #tpu.memory_space<vmem>>, %arg4: memref<32x96xbf16, #tpu.memory_space<vmem>>, %arg5: memref<1x96xf32, #tpu.memory_space<vmem>>, %arg6: memref<32x96xbf16, #tpu.memory_space<vmem>>, %arg7: memref<32x96xf32, #tpu.memory_space<vmem>>) attributes {dimension_semantics = [#tpu.dimension_semantics<parallel>, #tpu.dimension_semantics<parallel>, #tpu.dimension_semantics<arbitrary>], iteration_bounds = array<i64: 1, 1, 1>, scalar_prefetch = 0 : i64, scratch_operands = 1 : i64, tpu.core_type = #tpu.core_type<tc>, window_params = [{transform_indices = @transform_0, window_bounds = array<i64: 32, 32>}, {transform_indices = @transform_1, window_bounds = array<i64: 32, 96>}, {transform_indices = @transform_2, window_bounds = array<i64: 1, 96>}, {transform_indices = @transform_3, window_bounds = array<i64: 32, 96>}]} {
    %c0_i32 = arith.constant 0 : i32
    %0 = arith.cmpi eq, %arg2, %c0_i32 : i32
    %1 = arith.extui %0 : i1 to i32
    %c0_i32_0 = arith.constant 0 : i32
    %2 = arith.cmpi ne, %1, %c0_i32_0 : i32
    scf.if %2 {
      %cst_10 = arith.constant 0.000000e+00 : f32
      %12 = vector.broadcast %cst_10 : f32 to vector<32x96xf32>
      %c0_11 = arith.constant 0 : index
      %c0_12 = arith.constant 0 : index
      %13 = vector.load %arg7[%c0_11, %c0_12] : memref<32x96xf32, #tpu.memory_space<vmem>>, vector<32x96xf32>
      tpu.vector_store %arg7[%c0_11, %c0_12], %12 {strides = array<i32>} : memref<32x96xf32, #tpu.memory_space<vmem>>, vector<32x96xf32>,
    } else {
    }
    %c0 = arith.constant 0 : index
    %c0_1 = arith.constant 0 : index
    %3 = vector.load %arg3[%c0, %c0_1] : memref<32x32xbf16, #tpu.memory_space<vmem>>, vector<32x32xbf16>
    %c0_2 = arith.constant 0 : index
    %c0_3 = arith.constant 0 : index
    %4 = vector.load %arg4[%c0_2, %c0_3] : memref<32x96xbf16, #tpu.memory_space<vmem>>, vector<32x96xbf16>
    %c0_4 = arith.constant 0 : index
    %c0_5 = arith.constant 0 : index
    %5 = vector.load %arg7[%c0_4, %c0_5] : memref<32x96xf32, #tpu.memory_space<vmem>>, vector<32x96xf32>
    %cst = arith.constant dense<0.000000e+00> : vector<32x96xf32>
    %6 = tpu.matmul %3, %4, %cst {dimension_numbers = #tpu.dot_dimension_numbers<[1], [0], [0], [1], [0, 0, 1, 1], [], []>} : vector<32x32xbf16>, vector<32x96xbf16>, vector<32x96xf32> -> vector<32x96xf32>
    %7 = arith.addf %5, %6 : vector<32x96xf32>
    %c0_6 = arith.constant 0 : index
    %c0_7 = arith.constant 0 : index
    %8 = vector.load %arg7[%c0_6, %c0_7] : memref<32x96xf32, #tpu.memory_space<vmem>>, vector<32x96xf32>
    tpu.vector_store %arg7[%c0_6, %c0_7], %7 {strides = array<i32>} : memref<32x96xf32, #tpu.memory_space<vmem>>, vector<32x96xf32>,
    %c0_i32_8 = arith.constant 0 : i32
    %9 = arith.cmpi eq, %arg2, %c0_i32_8 : i32
    %10 = arith.extui %9 : i1 to i32
    %c0_i32_9 = arith.constant 0 : i32
    %11 = arith.cmpi ne, %10, %c0_i32_9 : i32
    scf.if %11 {
      %c0_10 = arith.constant 0 : index
      %c0_11 = arith.constant 0 : index
      %12 = vector.load %arg7[%c0_10, %c0_11] : memref<32x96xf32, #tpu.memory_space<vmem>>, vector<32x96xf32>
      %c0_12 = arith.constant 0 : index
      %c0_13 = arith.constant 0 : index
      %13 = vector.load %arg5[%c0_12, %c0_13] : memref<1x96xf32, #tpu.memory_space<vmem>>, vector<1x96xf32>
      %14 = vector.broadcast %13 : vector<1x96xf32> to vector<32x96xf32>
      %15 = arith.addf %12, %14 : vector<32x96xf32>
      %16 = arith.truncf %15 : vector<32x96xf32> to vector<32x96xbf16>
      %c0_14 = arith.constant 0 : index
      %c0_15 = arith.constant 0 : index
      %17 = vector.load %arg6[%c0_14, %c0_15] : memref<32x96xbf16, #tpu.memory_space<vmem>>, vector<32x96xbf16>
      tpu.vector_store %arg6[%c0_14, %c0_15], %16 {strides = array<i32>} : memref<32x96xbf16, #tpu.memory_space<vmem>>, vector<32x96xbf16>,
    } else {
    }
    return
  }
  func.func @transform_0(%arg0: i32, %arg1: i32, %arg2: i32) -> (i32, i32) {
    %c0_i32 = arith.constant 0 : i32
    return %arg0, %arg2 : i32, i32
  }
  func.func @transform_1(%arg0: i32, %arg1: i32, %arg2: i32) -> (i32, i32) {
    %c0_i32 = arith.constant 0 : i32
    return %arg2, %arg1 : i32, i32
  }
  func.func @transform_2(%arg0: i32, %arg1: i32, %arg2: i32) -> (i32, i32) {
    %c0_i32 = arith.constant 0 : i32
    %c0_i32_0 = arith.constant 0 : i32
    return %c0_i32, %arg1 : i32, i32
  }
  func.func @transform_3(%arg0: i32, %arg1: i32, %arg2: i32) -> (i32, i32) {
    %c0_i32 = arith.constant 0 : i32
    return %arg0, %arg1 : i32, i32
  }
}

</mosaic_0001>

<llo_original>
// kernel: tpu_custom_call.1
$region0: #{tpu_custom_call.1}
  #allocation0 [shape = 'u32[]', space=smem, size = 0x4, offset = 0x4, fixed_abs, tag = 'smem constant byte address 0x4 - core index']
  #allocation1 [shape = 'u32[144,128]{1,0:T(1,128)}', space=vmem, size = 0x12000, scoped, tag = 'internal scratch']
  #allocation2 [shape = 'f32[32,96]{1,0:T(8,128)}', space=vmem, size = 0x4000, scoped, tag = 'scratch operand']
  %s0 = inlined_call_operand.hbm [shape: bf16[32,32], index: 0, kind: input, shape index: {}]
  %s1 = inlined_call_operand.hbm [shape: bf16[32,96], index: 1, kind: input, shape index: {}]
  %s2 = inlined_call_operand.vmem [shape: f32[1,96], index: 2, kind: input, shape index: {}]
  %s3 = inlined_call_operand.hbm [shape: bf16[32,96], index: 3, kind: output, shape index: {}]
  %s4 = sld [smem:[#allocation0]]
  $region38: #{tpu_custom_call.1} parent=0
    _
  %s6 = ssub.s32 1, %s4
  %s7 = scalar_select 0, %s6, %s4
  $region1: #{tpu_custom_call.1} parent=0
    #allocation3 [shape = 'u8[8192]{0}', space=vmem, size = 0x2000, scoped, tag = 'input window, operand 0, single buffered']
    #allocation4 [shape = 's32[1]{0}', space=sflag, size = 0x4, scoped, tag = 'scoped memory for tpu_custom_call.1']
    #allocation5 [shape = 's32[1]{0}', space=sflag, size = 0x4, scoped, tag = 'scoped memory for tpu_custom_call.1']
    #allocation6 [shape = 'u8[8192]{0}', space=vmem, size = 0x2000, scoped, tag = 'input window, operand 1, single buffered']
    #allocation7 [shape = 's32[1]{0}', space=sflag, size = 0x4, scoped, tag = 'scoped memory for tpu_custom_call.1']
    #allocation8 [shape = 'u8[8192]{0}', space=vmem, size = 0x2000, scoped, tag = 'output window, operand 0, single buffered']
    %8 = vsyncpa [#allocation4], 0
    %9 = vsyncpa [#allocation7], 0
    %10 = vsyncpa [#allocation5], 0
    // Predicated region
    $region2: #{tpu_custom_call.1} parent=1 // pred_check
      _
    $region3: #{tpu_custom_call.1} parent=1 // pred_check_branch
      %12 = sbr.rel (0) target = $region5
    $region4: #{tpu_custom_call.1} parent=1 // pred_region
      %s14 = ssub.s32 256, 256
      %15 = vsyncadd [#allocation4], %s14
      %s16 = sshll.u32 [#allocation3], 4
      %s17 = int_to_ptr.vmem [resolvable:$true] %s16
      %22 = dma.hbm_to_vmem [thread:$0]  %s0, 256, %s17, [#allocation4], 64, 64, 4
    $region5: #{tpu_custom_call.1} parent=1 // pred_fallthru
      _
    // Predicated region
    $region6: #{tpu_custom_call.1} parent=1 // pred_check
      _
    $region7: #{tpu_custom_call.1} parent=1 // pred_check_branch
      %24 = sbr.rel (0) target = $region9
    $region8: #{tpu_custom_call.1} parent=1 // pred_region
      %s26 = ssub.s32 256, 256
      %27 = vsyncadd [#allocation7], %s26
      %s28 = sshll.u32 [#allocation6], 4
      %s29 = int_to_ptr.vmem [resolvable:$true] %s28
      %34 = dma.hbm_to_vmem [thread:$0]  %s1, 256, %s29, [#allocation7], 64, 64, 4
    $region9: #{tpu_custom_call.1} parent=1 // pred_fallthru
      _
    // Predicated region
    $region10: #{tpu_custom_call.1} parent=1 // pred_check
      _
    $region11: #{tpu_custom_call.1} parent=1 // pred_check_branch
      %36 = sbr.rel (0) target = $region13
    $region12: #{tpu_custom_call.1} parent=1 // pred_region
      _
    $region13: #{tpu_custom_call.1} parent=1 // pred_fallthru
      _
    // Predicated region
    $region14: #{tpu_custom_call.1} parent=1 // pred_check
      _
    $region15: #{tpu_custom_call.1} parent=1 // pred_check_branch
      %38 = sbr.rel (0) target = $region17
    $region16: #{tpu_custom_call.1} parent=1 // pred_region
      %39 = dma.done [#allocation4], 256
    $region17: #{tpu_custom_call.1} parent=1 // pred_fallthru
      _
    // Predicated region
    $region18: #{tpu_custom_call.1} parent=1 // pred_check
      _
    $region19: #{tpu_custom_call.1} parent=1 // pred_check_branch
      %41 = sbr.rel (0) target = $region21
    $region20: #{tpu_custom_call.1} parent=1 // pred_region
      %42 = dma.done [#allocation7], 256
    $region21: #{tpu_custom_call.1} parent=1 // pred_fallthru
      _
    %p44 = scmp.eq.s32.totalorder 0, 0
    // Predicated region
    $region22: #{tpu_custom_call.1} parent=1 // pred_check
      %p45 = pneg %p44
    $region23: #{tpu_custom_call.1} parent=1 // pred_check_branch
      %47 = sbr.rel (%p45) target = $region25
    $region24: #{tpu_custom_call.1} parent=1 // pred_region
      %vm48 = vcmask 785408
      %49 = vst.msk [vmem:[#allocation2] sm:$0xff] %vm48, 0.0
      %50 = vst.msk [vmem:[#allocation2 + $0x8] sm:$0xff] %vm48, 0.0
      %51 = vst.msk [vmem:[#allocation2 + $0x10] sm:$0xff] %vm48, 0.0
      %52 = vst.msk [vmem:[#allocation2 + $0x18] sm:$0xff] %vm48, 0.0
    $region25: #{tpu_custom_call.1} parent=1 // pred_fallthru
      _
    %v53 = vld [vmem:[#allocation3] sm:$0xf]
    %v54 = vld [vmem:[#allocation3 + $0x4] sm:$0xf]
    %v55 = vld [vmem:[#allocation3 + $0x8] sm:$0xf]
    %v56 = vld [vmem:[#allocation3 + $0xc] sm:$0xf]
    %v57 = vld [vmem:[#allocation6] sm:$0xf]
    %v58 = vld [vmem:[#allocation6 + $0x4] sm:$0xf]
    %v59 = vld [vmem:[#allocation6 + $0x8] sm:$0xf]
    %v60 = vld [vmem:[#allocation6 + $0xc] sm:$0xf]
    %v61 = vld [vmem:[#allocation2] sm:$0xff]
    %v62 = vld [vmem:[#allocation2 + $0x8] sm:$0xff]
    %v63 = vld [vmem:[#allocation2 + $0x10] sm:$0xff]
    %v64 = vld [vmem:[#allocation2 + $0x18] sm:$0xff]
    %v69 = vunpack.c.l.b16 %v53
    %v70 = vunpack.c.l.b16 %v54
    %v71 = vunpack.c.l.b16 %v55
    %v72 = vunpack.c.l.b16 %v56
    %v73 = vpack.c.b16 %v70, %v69
    %v74 = vpack.c.b16 %v72, %v71
    %v79 = vunpack.c.l.b16 %v57
    %v80 = vunpack.c.l.b16 %v58
    %v81 = vunpack.c.l.b16 %v59
    %v82 = vunpack.c.l.b16 %v60
    %v83 = vpack.c.b16 %v80, %v79
    %v84 = vpack.c.b16 %v82, %v81
    %vm87 = vcmask 261120
    %v89 = vsel %vm87, %v73, 0
    %v92 = vsel %vm87, %v74, 0
    %94 = vmatprep.subr.bf16.mxu0 0
    %95 = vmatpush1.bf16.msra.mxu0 %v83
    %96 = vmatprep.subr.bf16.mxu0 0
    %97 = vmatpush1.bf16.msra.mxu0 %v84
    %98 = vmatprep.subr.bf16.mxu0 0
    %99 = vmatpush1.bf16.msra.mxu0 0
    %100 = vmatprep.subr.bf16.mxu0 0
    %101 = vmatpush1.bf16.msra.mxu0 0
    %102 = vmatprep.subr.bf16.mxu0 0
    %103 = vmatpush1.bf16.msra.mxu0 0
    %104 = vmatprep.subr.bf16.mxu0 0
    %105 = vmatpush1.bf16.msra.mxu0 0
    %106 = vmatprep.subr.bf16.mxu0 0
    %107 = vmatpush1.bf16.msra.mxu0 0
    %108 = vmatprep.subr.bf16.mxu0 0
    %109 = vmatpush1.bf16.msra.mxu0 0
    %110 = vmatprep.subr.bf16.mxu0 0
    %111 = vmatpush1.bf16.msra.mxu0 0
    %112 = vmatprep.subr.bf16.mxu0 0
    %113 = vmatpush1.bf16.msra.mxu0 0
    %114 = vmatprep.subr.bf16.mxu0 0
    %115 = vmatpush1.bf16.msra.mxu0 0
    %116 = vmatprep.subr.bf16.mxu0 0
    %117 = vmatpush1.bf16.msra.mxu0 0
    %118 = vmatprep.subr.bf16.mxu0 0
    %119 = vmatpush1.bf16.msra.mxu0 0
    %120 = vmatprep.subr.bf16.mxu0 0
    %121 = vmatpush1.bf16.msra.mxu0 0
    %122 = vmatprep.subr.bf16.mxu0 0
    %123 = vmatpush1.bf16.msra.mxu0 0
    %124 = vmatprep.subr.bf16.mxu0 0
    %125 = vmatpush1.bf16.msra.mxu0 0
    %126 = vmatprep.mubr.bf16.mxu0 0
    %127 = vmatmul.mubr.bf16.gmra.mrb[0].mxu0 %v89
    %v128 = vpop.f32.mrb[0].mxu0
    %v129 = vadd.f32 0.0, %v128
    %v130 = vpop.f32.mrb[0].mxu0
    %v131 = vpop.f32.mrb[0].mxu0
    %v132 = vadd.f32 0.0, %v131
    %v133 = vpop.f32.mrb[0].mxu0
    %134 = vmatprep.mubr.bf16.mxu0 0
    %135 = vmatmul.mubr.bf16.gmra.mrb[0].mxu0 %v92
    %v136 = vpop.f32.mrb[0].mxu0
    %v137 = vadd.f32 0.0, %v136
    %v138 = vpop.f32.mrb[0].mxu0
    %v139 = vpop.f32.mrb[0].mxu0
    %v140 = vadd.f32 0.0, %v139
    %v141 = vpop.f32.mrb[0].mxu0
    %142 = vdwg.mxu0
    %v143 = vadd.f32 %v61, %v129
    %v144 = vadd.f32 %v62, %v132
    %v145 = vadd.f32 %v63, %v137
    %v146 = vadd.f32 %v64, %v140
    %vm147 = vcmask 785408
    %148 = vst.msk [vmem:[#allocation2] sm:$0xff] %vm147, %v143
    %149 = vst.msk [vmem:[#allocation2 + $0x8] sm:$0xff] %vm147, %v144
    %150 = vst.msk [vmem:[#allocation2 + $0x10] sm:$0xff] %vm147, %v145
    %151 = vst.msk [vmem:[#allocation2 + $0x18] sm:$0xff] %vm147, %v146
    // Predicated region
    $region26: #{tpu_custom_call.1} parent=1 // pred_check
      %p152 = pneg %p44
    $region27: #{tpu_custom_call.1} parent=1 // pred_check_branch
      %154 = sbr.rel (%p152) target = $region29
    $region28: #{tpu_custom_call.1} parent=1 // pred_region
      %v155 = vld [vmem:[#allocation2] sm:$0xff]
      %v156 = vld [vmem:[#allocation2 + $0x8] sm:$0xff]
      %v157 = vld [vmem:[#allocation2 + $0x10] sm:$0xff]
      %v158 = vld [vmem:[#allocation2 + $0x18] sm:$0xff]
      %v159 = vld [vmem:[%s2] sm:$0x1]
      %v161 = vlaneseq
      %v162 = vshrl.u32 %v161, 7
      %v163 = vsub.s32 0, %v162
      %v164 = vrot.slane %v159, %v163
      %v166 = vadd.f32 %v155, %v164
      %v167 = vadd.f32 %v156, %v164
      %v168 = vadd.f32 %v157, %v164
      %v169 = vadd.f32 %v158, %v164
      %v170 = vpack.c.bf16 %v167, %v166
      %v171 = vpack.c.bf16 %v169, %v168
      %v174 = vunpack.c.l.b16 %v170
      %v175 = vunpack.c.h.b16 %v170
      %v176 = vunpack.c.l.b16 %v171
      %v177 = vunpack.c.h.b16 %v171
      %v178 = vpack.c.b16 %v174, %v174
      %v179 = vpack.c.b16 %v175, %v175
      %v180 = vpack.c.b16 %v176, %v176
      %v181 = vpack.c.b16 %v177, %v177
      %vm186 = vcmask 781312
      %187 = vst.msk [vmem:[#allocation8] sm:$0xf] %vm186, %v178
      %188 = vst.msk [vmem:[#allocation8 + $0x4] sm:$0xf] %vm186, %v179
      %189 = vst.msk [vmem:[#allocation8 + $0x8] sm:$0xf] %vm186, %v180
      %190 = vst.msk [vmem:[#allocation8 + $0xc] sm:$0xf] %vm186, %v181
    $region29: #{tpu_custom_call.1} parent=1 // pred_fallthru
      _
    // Predicated region
    $region30: #{tpu_custom_call.1} parent=1 // pred_check
      _
    $region31: #{tpu_custom_call.1} parent=1 // pred_check_branch
      %192 = sbr.rel (0) target = $region33
    $region32: #{tpu_custom_call.1} parent=1 // pred_region
      %s194 = ssub.s32 256, 256
      %195 = vsyncadd [#allocation5], %s194
      %s196 = sshll.u32 [#allocation8], 4
      %s197 = int_to_ptr.vmem [resolvable:$true] %s196
      %202 = dma.vmem_to_hbm [thread:$0]  %s197, 256, %s3, [#allocation5], 64, 64, 4
    $region33: #{tpu_custom_call.1} parent=1 // pred_fallthru
      _
    // Predicated region
    $region34: #{tpu_custom_call.1} parent=1 // pred_check
      _
    $region35: #{tpu_custom_call.1} parent=1 // pred_check_branch
      %204 = sbr.rel (0) target = $region37
    $region36: #{tpu_custom_call.1} parent=1 // pred_region
      %205 = dma.done [#allocation5], 256
    $region37: #{tpu_custom_call.1} parent=1 // pred_fallthru
      _
    %206 = vsyncpa [#allocation4], 1
    %207 = vsyncpa [#allocation7], 1
    %208 = vsyncpa [#allocation5], 1

</llo_original>
